<compile_context>
chip_gen: v7x
topology: tpu7x:2x2x1
jax: 0.10.0
libtpu: 0.0.40
codegen_flags: <defaults>
</compile_context>

<pallas_src>
import functools

import jax
import jax.numpy as jnp
from jax.experimental import pallas as pl
from jax.experimental.pallas import tpu as pltpu

INPUT_DIM = 2
HIDDEN_DIM = 64


def _mlp_kernel(xt_ref, w1_ref, b1_ref, w2_ref, b2_ref, w3_ref, b3_ref, ot_ref):
    xt = xt_ref[...]          # (d, TB)   batch on lanes
    w1 = w1_ref[...]          # (H, d)
    d = xt.shape[0]

    # Layer 1: Linear(d -> H) + ReLU.  K == d is tiny, so use VPU broadcast
    # FMAs (outer-product accumulation) instead of burning an MXU pass.
    h = w1[:, 0:1] * xt[0:1, :]                      # (H, TB)
    for k in range(1, d):                            # d is static (== 2)
        h = h + w1[:, k:k + 1] * xt[k:k + 1, :]
    h = jnp.maximum(h + b1_ref[...], 0.0)            # (H, TB)

    # Layer 2: Linear(H -> H) + ReLU, MXU matmul with f32 accumulation.
    h = jnp.dot(w2_ref[...], h, preferred_element_type=jnp.float32)
    h = jnp.maximum(h + b2_ref[...], 0.0)            # (H, TB)

    # Layer 3: Linear(H -> d*d), no activation.  Output is (d*d, TB):
    # lane-dense store (last dim is the batch tile, a multiple of 128).
    out = jnp.dot(w3_ref[...], h, preferred_element_type=jnp.float32)
    ot_ref[...] = (out + b3_ref[...]).astype(ot_ref.dtype)


@functools.partial(jax.jit, static_argnames=("block_b",))
def diffusion_nn_forward(x, params, *, block_b=256):
    """Forward pass of DiffusionNN. x: (B, input_dim) -> (B, input_dim, input_dim)."""
    w1, b1, w2, b2, w3, b3 = params
    B, d = x.shape
    H = w1.shape[0]
    dd = w3.shape[0]          # == d * d

    # Pad batch up to a multiple of the batch tile (tile last dim must be a
    # multiple of 128 lanes); padded columns are computed then sliced away.
    n_tiles = pl.cdiv(B, block_b)
    Bp = n_tiles * block_b
    xt = jnp.zeros((d, Bp), x.dtype).at[:, :B].set(x.T)

    cost = pl.CostEstimate(
        flops=2 * Bp * (d * H + H * H + H * dd),
        transcendentals=0,
        bytes_accessed=4 * (d * Bp + dd * Bp + H * d + H * H + dd * H + 2 * H + dd),
    )

    out_t = pl.pallas_call(
        _mlp_kernel,
        out_shape=jax.ShapeDtypeStruct((dd, Bp), jnp.float32),
        grid=(n_tiles,),
        in_specs=[
            # x tile streams over the batch grid (lane-dense).
            pl.BlockSpec((d, block_b), lambda i: (0, i)),
            # Weights / biases: whole-array blocks, resident across the grid.
            pl.BlockSpec(w1.shape, lambda i: (0, 0)),
            pl.BlockSpec(b1.shape, lambda i: (0, 0)),
            pl.BlockSpec(w2.shape, lambda i: (0, 0)),
            pl.BlockSpec(b2.shape, lambda i: (0, 0)),
            pl.BlockSpec(w3.shape, lambda i: (0, 0)),
            pl.BlockSpec(b3.shape, lambda i: (0, 0)),
        ],
        out_specs=pl.BlockSpec((dd, block_b), lambda i: (0, i)),
        compiler_params=pltpu.CompilerParams(
            dimension_semantics=("parallel",),
        ),
        cost_estimate=cost,
    )(xt, w1, b1, w2, b2, w3, b3)

    # Un-transpose, drop batch padding, then PyTorch's output.view(B, d, d).
    out = out_t[:, :B].T
    return out.reshape(B, d, d)


def init_params(key, input_dim=INPUT_DIM, hidden_dim=HIDDEN_DIM):
    """Deterministic init matching PyTorch nn.Linear layout:
    weights (out_features, in_features), biases (out_features, 1),
    uniform(-1/sqrt(fan_in), 1/sqrt(fan_in))."""
    ks = jax.random.split(key, 6)

    def lin(kw, kb, fan_in, fan_out):
        bound = 1.0 / jnp.sqrt(fan_in)
        w = jax.random.uniform(kw, (fan_out, fan_in), jnp.float32, -bound, bound)
        b = jax.random.uniform(kb, (fan_out, 1), jnp.float32, -bound, bound)
        return w, b

    w1, b1 = lin(ks[0], ks[1], input_dim, hidden_dim)
    w2, b2 = lin(ks[2], ks[3], hidden_dim, hidden_dim)
    w3, b3 = lin(ks[4], ks[5], hidden_dim, input_dim * input_dim)
    return (w1, b1, w2, b2, w3, b3)


def _reference(x, params):
    w1, b1, w2, b2, w3, b3 = params
    h = jnp.maximum(x @ w1.T + b1.T, 0.0)
    h = jnp.maximum(h @ w2.T + b2.T, 0.0)
    out = h @ w3.T + b3.T
    return out.reshape(x.shape[0], x.shape[1], x.shape[1])


if __name__ == "__main__":
    key = jax.random.PRNGKey(0)
    k_params, k_x = jax.random.split(key)

    batch = 8
    x = jax.random.normal(k_x, (batch, INPUT_DIM), dtype=jnp.float32)
    params = init_params(k_params)

    out = diffusion_nn_forward(x, params)
    jax.block_until_ready(out)

    assert out.shape == (batch, INPUT_DIM, INPUT_DIM), out.shape

    ref = _reference(x, params)
    err = float(jnp.max(jnp.abs(out - ref)))
    assert jnp.allclose(out, ref, atol=1e-5, rtol=1e-5), err

    print("KERNEL_OK")
</pallas_src>

<mosaic_0001>
module attributes {stable_mosaic.version = 11 : i64} {
  func.func @_mlp_kernel(%arg0: i32, %arg1: memref<2x256xf32, #tpu.memory_space<vmem>>, %arg2: memref<64x2xf32, #tpu.memory_space<vmem>>, %arg3: memref<64x1xf32, #tpu.memory_space<vmem>>, %arg4: memref<64x64xf32, #tpu.memory_space<vmem>>, %arg5: memref<64x1xf32, #tpu.memory_space<vmem>>, %arg6: memref<4x64xf32, #tpu.memory_space<vmem>>, %arg7: memref<4x1xf32, #tpu.memory_space<vmem>>, %arg8: memref<4x256xf32, #tpu.memory_space<vmem>>) attributes {dimension_semantics = [#tpu.dimension_semantics<parallel>], iteration_bounds = array<i64: 1>, scalar_prefetch = 0 : i64, scratch_operands = 0 : i64, tpu.core_type = #tpu.core_type<tc>, window_params = [{transform_indices = @transform_0, window_bounds = array<i64: 2, 256>}, {pipeline_mode = #tpu.pipeline_mode<synchronous>, transform_indices = @transform_1, window_bounds = array<i64: 64, 2>}, {pipeline_mode = #tpu.pipeline_mode<synchronous>, transform_indices = @transform_2, window_bounds = array<i64: 64, 1>}, {pipeline_mode = #tpu.pipeline_mode<synchronous>, transform_indices = @transform_3, window_bounds = array<i64: 64, 64>}, {pipeline_mode = #tpu.pipeline_mode<synchronous>, transform_indices = @transform_4, window_bounds = array<i64: 64, 1>}, {pipeline_mode = #tpu.pipeline_mode<synchronous>, transform_indices = @transform_5, window_bounds = array<i64: 4, 64>}, {pipeline_mode = #tpu.pipeline_mode<synchronous>, transform_indices = @transform_6, window_bounds = array<i64: 4, 1>}, {transform_indices = @transform_7, window_bounds = array<i64: 4, 256>}]} {
    %c0 = arith.constant 0 : index
    %c0_0 = arith.constant 0 : index
    %0 = vector.load %arg1[%c0, %c0_0] : memref<2x256xf32, #tpu.memory_space<vmem>>, vector<2x256xf32>
    %c0_1 = arith.constant 0 : index
    %c0_2 = arith.constant 0 : index
    %1 = vector.load %arg2[%c0_1, %c0_2] : memref<64x2xf32, #tpu.memory_space<vmem>>, vector<64x2xf32>
    %2 = vector.extract_strided_slice %1 {offsets = [0, 0], sizes = [64, 1], strides = [1, 1]} : vector<64x2xf32> to vector<64x1xf32>
    %3 = vector.extract_strided_slice %0 {offsets = [0, 0], sizes = [1, 256], strides = [1, 1]} : vector<2x256xf32> to vector<1x256xf32>
    %4 = vector.broadcast %2 : vector<64x1xf32> to vector<64x256xf32>
    %5 = vector.broadcast %3 : vector<1x256xf32> to vector<64x256xf32>
    %6 = arith.mulf %4, %5 : vector<64x256xf32>
    %7 = vector.extract_strided_slice %1 {offsets = [0, 1], sizes = [64, 1], strides = [1, 1]} : vector<64x2xf32> to vector<64x1xf32>
    %8 = vector.extract_strided_slice %0 {offsets = [1, 0], sizes = [1, 256], strides = [1, 1]} : vector<2x256xf32> to vector<1x256xf32>
    %9 = vector.broadcast %7 : vector<64x1xf32> to vector<64x256xf32>
    %10 = vector.broadcast %8 : vector<1x256xf32> to vector<64x256xf32>
    %11 = arith.mulf %9, %10 : vector<64x256xf32>
    %12 = arith.addf %6, %11 : vector<64x256xf32>
    %c0_3 = arith.constant 0 : index
    %c0_4 = arith.constant 0 : index
    %13 = vector.load %arg3[%c0_3, %c0_4] : memref<64x1xf32, #tpu.memory_space<vmem>>, vector<64x1xf32>
    %14 = vector.broadcast %13 : vector<64x1xf32> to vector<64x256xf32>
    %15 = arith.addf %12, %14 : vector<64x256xf32>
    %cst = arith.constant 0.000000e+00 : f32
    %16 = vector.broadcast %cst : f32 to vector<64x256xf32>
    %17 = arith.maximumf %15, %16 : vector<64x256xf32>
    %c0_5 = arith.constant 0 : index
    %c0_6 = arith.constant 0 : index
    %18 = vector.load %arg4[%c0_5, %c0_6] : memref<64x64xf32, #tpu.memory_space<vmem>>, vector<64x64xf32>
    %cst_7 = arith.constant dense<0.000000e+00> : vector<64x256xf32>
    %19 = tpu.matmul %18, %17, %cst_7 {dimension_numbers = #tpu.dot_dimension_numbers<[1], [0], [0], [1], [0, 0, 1, 1], [], []>} : vector<64x64xf32>, vector<64x256xf32>, vector<64x256xf32> -> vector<64x256xf32>
    %c0_8 = arith.constant 0 : index
    %c0_9 = arith.constant 0 : index
    %20 = vector.load %arg5[%c0_8, %c0_9] : memref<64x1xf32, #tpu.memory_space<vmem>>, vector<64x1xf32>
    %21 = vector.broadcast %20 : vector<64x1xf32> to vector<64x256xf32>
    %22 = arith.addf %19, %21 : vector<64x256xf32>
    %cst_10 = arith.constant 0.000000e+00 : f32
    %23 = vector.broadcast %cst_10 : f32 to vector<64x256xf32>
    %24 = arith.maximumf %22, %23 : vector<64x256xf32>
    %c0_11 = arith.constant 0 : index
    %c0_12 = arith.constant 0 : index
    %25 = vector.load %arg6[%c0_11, %c0_12] : memref<4x64xf32, #tpu.memory_space<vmem>>, vector<4x64xf32>
    %cst_13 = arith.constant dense<0.000000e+00> : vector<4x256xf32>
    %26 = tpu.matmul %25, %24, %cst_13 {dimension_numbers = #tpu.dot_dimension_numbers<[1], [0], [0], [1], [0, 0, 1, 1], [], []>} : vector<4x64xf32>, vector<64x256xf32>, vector<4x256xf32> -> vector<4x256xf32>
    %c0_14 = arith.constant 0 : index
    %c0_15 = arith.constant 0 : index
    %27 = vector.load %arg7[%c0_14, %c0_15] : memref<4x1xf32, #tpu.memory_space<vmem>>, vector<4x1xf32>
    %28 = vector.broadcast %27 : vector<4x1xf32> to vector<4x256xf32>
    %29 = arith.addf %26, %28 : vector<4x256xf32>
    %c0_16 = arith.constant 0 : index
    %c0_17 = arith.constant 0 : index
    %30 = vector.load %arg8[%c0_16, %c0_17] : memref<4x256xf32, #tpu.memory_space<vmem>>, vector<4x256xf32>
    tpu.vector_store %arg8[%c0_16, %c0_17], %29 {strides = array<i32>} : memref<4x256xf32, #tpu.memory_space<vmem>>, vector<4x256xf32>,
    return
  }
  func.func @transform_0(%arg0: i32) -> (i32, i32) {
    %c0_i32 = arith.constant 0 : i32
    %c0_i32_0 = arith.constant 0 : i32
    return %c0_i32, %arg0 : i32, i32
  }
  func.func @transform_1(%arg0: i32) -> (i32, i32) {
    %c0_i32 = arith.constant 0 : i32
    %c0_i32_0 = arith.constant 0 : i32
    %c0_i32_1 = arith.constant 0 : i32
    return %c0_i32, %c0_i32_0 : i32, i32
  }
  func.func @transform_2(%arg0: i32) -> (i32, i32) {
    %c0_i32 = arith.constant 0 : i32
    %c0_i32_0 = arith.constant 0 : i32
    %c0_i32_1 = arith.constant 0 : i32
    return %c0_i32, %c0_i32_0 : i32, i32
  }
  func.func @transform_3(%arg0: i32) -> (i32, i32) {
    %c0_i32 = arith.constant 0 : i32
    %c0_i32_0 = arith.constant 0 : i32
    %c0_i32_1 = arith.constant 0 : i32
    return %c0_i32, %c0_i32_0 : i32, i32
  }
  func.func @transform_4(%arg0: i32) -> (i32, i32) {
    %c0_i32 = arith.constant 0 : i32
    %c0_i32_0 = arith.constant 0 : i32
    %c0_i32_1 = arith.constant 0 : i32
    return %c0_i32, %c0_i32_0 : i32, i32
  }
  func.func @transform_5(%arg0: i32) -> (i32, i32) {
    %c0_i32 = arith.constant 0 : i32
    %c0_i32_0 = arith.constant 0 : i32
    %c0_i32_1 = arith.constant 0 : i32
    return %c0_i32, %c0_i32_0 : i32, i32
  }
  func.func @transform_6(%arg0: i32) -> (i32, i32) {
    %c0_i32 = arith.constant 0 : i32
    %c0_i32_0 = arith.constant 0 : i32
    %c0_i32_1 = arith.constant 0 : i32
    return %c0_i32, %c0_i32_0 : i32, i32
  }
  func.func @transform_7(%arg0: i32) -> (i32, i32) {
    %c0_i32 = arith.constant 0 : i32
    %c0_i32_0 = arith.constant 0 : i32
    return %c0_i32, %arg0 : i32, i32
  }
}

</mosaic_0001>

<llo_original>
// kernel: diffusion_nn_forward.1
$region0: #{diffusion_nn_forward.1}
  #allocation0 [shape = 'u32[]', space=smem, size = 0x4, offset = 0x4, fixed_abs, tag = 'smem constant byte address 0x4 - core index']
  #allocation1 [shape = 'u32[144,128]{1,0:T(1,128)}', space=vmem, size = 0x12000, scoped, tag = 'internal scratch']
  %s0 = inlined_call_operand.vmem [shape: f32[2,256], index: 0, kind: input, shape index: {}]
  %s1 = inlined_call_operand.vmem [shape: f32[64,2], index: 1, kind: input, shape index: {}]
  %s2 = inlined_call_operand.vmem [shape: f32[64,1], index: 2, kind: input, shape index: {}]
  %s3 = inlined_call_operand.vmem [shape: f32[64,64], index: 3, kind: input, shape index: {}]
  %s4 = inlined_call_operand.vmem [shape: f32[64,1], index: 4, kind: input, shape index: {}]
  %s5 = inlined_call_operand.vmem [shape: f32[4,64], index: 5, kind: input, shape index: {}]
  %s6 = inlined_call_operand.vmem [shape: f32[4,1], index: 6, kind: input, shape index: {}]
  %s7 = inlined_call_operand.vmem [shape: f32[4,256], index: 7, kind: output, shape index: {}]
  %s8 = sld [smem:[#allocation0]]
  $region38: #{diffusion_nn_forward.1} parent=0
    _
  %s10 = ssub.s32 1, %s8
  %s11 = scalar_select 0, %s10, %s8
  // Predicated region
  $region2: #{diffusion_nn_forward.1} parent=0 // pred_check
    _
  $region3: #{diffusion_nn_forward.1} parent=0 // pred_check_branch
    %13 = sbr.rel (0) target = $region5
  $region4: #{diffusion_nn_forward.1} parent=0 // pred_region
    _
  $region5: #{diffusion_nn_forward.1} parent=0 // pred_fallthru
    _
  // Predicated region
  $region6: #{diffusion_nn_forward.1} parent=0 // pred_check
    _
  $region7: #{diffusion_nn_forward.1} parent=0 // pred_check_branch
    %15 = sbr.rel (0) target = $region9
  $region8: #{diffusion_nn_forward.1} parent=0 // pred_region
    _
  $region9: #{diffusion_nn_forward.1} parent=0 // pred_fallthru
    _
  // Predicated region
  $region10: #{diffusion_nn_forward.1} parent=0 // pred_check
    _
  $region11: #{diffusion_nn_forward.1} parent=0 // pred_check_branch
    %17 = sbr.rel (0) target = $region13
  $region12: #{diffusion_nn_forward.1} parent=0 // pred_region
    _
  $region13: #{diffusion_nn_forward.1} parent=0 // pred_fallthru
    _
  // Predicated region
  $region14: #{diffusion_nn_forward.1} parent=0 // pred_check
    _
  $region15: #{diffusion_nn_forward.1} parent=0 // pred_check_branch
    %19 = sbr.rel (0) target = $region17
  $region16: #{diffusion_nn_forward.1} parent=0 // pred_region
    _
  $region17: #{diffusion_nn_forward.1} parent=0 // pred_fallthru
    _
  // Predicated region
  $region18: #{diffusion_nn_forward.1} parent=0 // pred_check
    _
  $region19: #{diffusion_nn_forward.1} parent=0 // pred_check_branch
    %21 = sbr.rel (0) target = $region21
  $region20: #{diffusion_nn_forward.1} parent=0 // pred_region
    _
  $region21: #{diffusion_nn_forward.1} parent=0 // pred_fallthru
    _
  // Predicated region
  $region22: #{diffusion_nn_forward.1} parent=0 // pred_check
    _
  $region23: #{diffusion_nn_forward.1} parent=0 // pred_check_branch
    %23 = sbr.rel (0) target = $region25
  $region24: #{diffusion_nn_forward.1} parent=0 // pred_region
    _
  $region25: #{diffusion_nn_forward.1} parent=0 // pred_fallthru
    _
  // Predicated region
  $region26: #{diffusion_nn_forward.1} parent=0 // pred_check
    _
  $region27: #{diffusion_nn_forward.1} parent=0 // pred_check_branch
    %25 = sbr.rel (0) target = $region29
  $region28: #{diffusion_nn_forward.1} parent=0 // pred_region
    _
  $region29: #{diffusion_nn_forward.1} parent=0 // pred_fallthru
    _
  %v26 = vld [vmem:[%s0] sm:$0xf]
  %v27 = vld [vmem:[%s1] sm:$0xff]
  %v28 = vld [vmem:[%s1 + $0x8] sm:$0xff]
  %v29 = vld [vmem:[%s1 + $0x10] sm:$0xff]
  %v30 = vld [vmem:[%s1 + $0x18] sm:$0xff]
  %v31 = vld [vmem:[%s1 + $0x20] sm:$0xff]
  %v32 = vld [vmem:[%s1 + $0x28] sm:$0xff]
  %v33 = vld [vmem:[%s1 + $0x30] sm:$0xff]
  %v34 = vld [vmem:[%s1 + $0x38] sm:$0xff]
  %36 = vset.pattern.permute.xlu0 0
  %37 = vperm.xlu0 %36, %v27
  %v38 = vpop.permute.xlu0 %37
  %41 = vset.pattern.permute.xlu0 0
  %42 = vperm.xlu0 %41, %v28
  %v43 = vpop.permute.xlu0 %42
  %46 = vset.pattern.permute.xlu0 0
  %47 = vperm.xlu0 %46, %v29
  %v48 = vpop.permute.xlu0 %47
  %51 = vset.pattern.permute.xlu0 0
  %52 = vperm.xlu0 %51, %v30
  %v53 = vpop.permute.xlu0 %52
  %56 = vset.pattern.permute.xlu0 0
  %57 = vperm.xlu0 %56, %v31
  %v58 = vpop.permute.xlu0 %57
  %61 = vset.pattern.permute.xlu0 0
  %62 = vperm.xlu0 %61, %v32
  %v63 = vpop.permute.xlu0 %62
  %66 = vset.pattern.permute.xlu0 0
  %67 = vperm.xlu0 %66, %v33
  %v68 = vpop.permute.xlu0 %67
  %71 = vset.pattern.permute.xlu0 0
  %72 = vperm.xlu0 %71, %v34
  %v73 = vpop.permute.xlu0 %72
  %v76 = vlaneseq
  %v77 = vshrl.u32 %v76, 7
  %v78 = vsub.s32 0, %v77
  %v79 = vrot.slane %v26, %v78
  %v80 = vlaneseq
  %v81 = vshrl.u32 %v80, 7
  %v82 = vsub.s32 2, %v81
  %v83 = vrot.slane %v26, %v82
  %v86 = vlaneseq
  %v87 = vshrl.u32 %v86, 7
  %v88 = vsub.s32 0, %v87
  %v89 = vrot.slane %v79, %v88
  %v90 = vlaneseq
  %v91 = vshrl.u32 %v90, 7
  %v92 = vsub.s32 0, %v91
  %v93 = vrot.slane %v83, %v92
  %v94 = vmul.f32 %v38, %v89
  %v95 = vmul.f32 %v38, %v93
  %v96 = vmul.f32 %v43, %v89
  %v97 = vmul.f32 %v43, %v93
  %v98 = vmul.f32 %v48, %v89
  %v99 = vmul.f32 %v48, %v93
  %v100 = vmul.f32 %v53, %v89
  %v101 = vmul.f32 %v53, %v93
  %v102 = vmul.f32 %v58, %v89
  %v103 = vmul.f32 %v58, %v93
  %v104 = vmul.f32 %v63, %v89
  %v105 = vmul.f32 %v63, %v93
  %v106 = vmul.f32 %v68, %v89
  %v107 = vmul.f32 %v68, %v93
  %v108 = vmul.f32 %v73, %v89
  %v109 = vmul.f32 %v73, %v93
  %110 = vset.pattern.permute.xlu0 1
  %111 = vperm.xlu0 %110, %v27
  %v112 = vpop.permute.xlu0 %111
  %114 = vset.pattern.permute.xlu0 1
  %115 = vperm.xlu0 %114, %v28
  %v116 = vpop.permute.xlu0 %115
  %118 = vset.pattern.permute.xlu0 1
  %119 = vperm.xlu0 %118, %v29
  %v120 = vpop.permute.xlu0 %119
  %122 = vset.pattern.permute.xlu0 1
  %123 = vperm.xlu0 %122, %v30
  %v124 = vpop.permute.xlu0 %123
  %126 = vset.pattern.permute.xlu0 1
  %127 = vperm.xlu0 %126, %v31
  %v128 = vpop.permute.xlu0 %127
  %130 = vset.pattern.permute.xlu0 1
  %131 = vperm.xlu0 %130, %v32
  %v132 = vpop.permute.xlu0 %131
  %134 = vset.pattern.permute.xlu0 1
  %135 = vperm.xlu0 %134, %v33
  %v136 = vpop.permute.xlu0 %135
  %138 = vset.pattern.permute.xlu0 1
  %139 = vperm.xlu0 %138, %v34
  %v140 = vpop.permute.xlu0 %139
  %v142 = vlaneseq
  %v143 = vshrl.u32 %v142, 7
  %v144 = vsub.s32 1, %v143
  %v145 = vrot.slane %v26, %v144
  %v146 = vlaneseq
  %v147 = vshrl.u32 %v146, 7
  %v148 = vsub.s32 3, %v147
  %v149 = vrot.slane %v26, %v148
  %v152 = vlaneseq
  %v153 = vshrl.u32 %v152, 7
  %v154 = vsub.s32 1, %v153
  %v155 = vrot.slane %v145, %v154
  %v156 = vlaneseq
  %v157 = vshrl.u32 %v156, 7
  %v158 = vsub.s32 1, %v157
  %v159 = vrot.slane %v149, %v158
  %v160 = vmul.f32 %v112, %v155
  %v161 = vmul.f32 %v112, %v159
  %v162 = vmul.f32 %v116, %v155
  %v163 = vmul.f32 %v116, %v159
  %v164 = vmul.f32 %v120, %v155
  %v165 = vmul.f32 %v120, %v159
  %v166 = vmul.f32 %v124, %v155
  %v167 = vmul.f32 %v124, %v159
  %v168 = vmul.f32 %v128, %v155
  %v169 = vmul.f32 %v128, %v159
  %v170 = vmul.f32 %v132, %v155
  %v171 = vmul.f32 %v132, %v159
  %v172 = vmul.f32 %v136, %v155
  %v173 = vmul.f32 %v136, %v159
  %v174 = vmul.f32 %v140, %v155
  %v175 = vmul.f32 %v140, %v159
  %v176 = vadd.f32 %v94, %v160
  %v177 = vadd.f32 %v95, %v161
  %v178 = vadd.f32 %v96, %v162
  %v179 = vadd.f32 %v97, %v163
  %v180 = vadd.f32 %v98, %v164
  %v181 = vadd.f32 %v99, %v165
  %v182 = vadd.f32 %v100, %v166
  %v183 = vadd.f32 %v101, %v167
  %v184 = vadd.f32 %v102, %v168
  %v185 = vadd.f32 %v103, %v169
  %v186 = vadd.f32 %v104, %v170
  %v187 = vadd.f32 %v105, %v171
  %v188 = vadd.f32 %v106, %v172
  %v189 = vadd.f32 %v107, %v173
  %v190 = vadd.f32 %v108, %v174
  %v191 = vadd.f32 %v109, %v175
  %v192 = vld [vmem:[%s2] sm:$0xff]
  %v193 = vld [vmem:[%s2 + $0x8] sm:$0xff]
  %v194 = vld [vmem:[%s2 + $0x10] sm:$0xff]
  %v195 = vld [vmem:[%s2 + $0x18] sm:$0xff]
  %v196 = vld [vmem:[%s2 + $0x20] sm:$0xff]
  %v197 = vld [vmem:[%s2 + $0x28] sm:$0xff]
  %v198 = vld [vmem:[%s2 + $0x30] sm:$0xff]
  %v199 = vld [vmem:[%s2 + $0x38] sm:$0xff]
  %201 = vset.pattern.permute.xlu0 0
  %202 = vperm.xlu0 %201, %v192
  %v203 = vpop.permute.xlu0 %202
  %206 = vset.pattern.permute.xlu0 0
  %207 = vperm.xlu0 %206, %v193
  %v208 = vpop.permute.xlu0 %207
  %211 = vset.pattern.permute.xlu0 0
  %212 = vperm.xlu0 %211, %v194
  %v213 = vpop.permute.xlu0 %212
  %216 = vset.pattern.permute.xlu0 0
  %217 = vperm.xlu0 %216, %v195
  %v218 = vpop.permute.xlu0 %217
  %221 = vset.pattern.permute.xlu0 0
  %222 = vperm.xlu0 %221, %v196
  %v223 = vpop.permute.xlu0 %222
  %226 = vset.pattern.permute.xlu0 0
  %227 = vperm.xlu0 %226, %v197
  %v228 = vpop.permute.xlu0 %227
  %231 = vset.pattern.permute.xlu0 0
  %232 = vperm.xlu0 %231, %v198
  %v233 = vpop.permute.xlu0 %232
  %236 = vset.pattern.permute.xlu0 0
  %237 = vperm.xlu0 %236, %v199
  %v238 = vpop.permute.xlu0 %237
  %v240 = vadd.f32 %v176, %v203
  %v241 = vadd.f32 %v177, %v203
  %v242 = vadd.f32 %v178, %v208
  %v243 = vadd.f32 %v179, %v208
  %v244 = vadd.f32 %v180, %v213
  %v245 = vadd.f32 %v181, %v213
  %v246 = vadd.f32 %v182, %v218
  %v247 = vadd.f32 %v183, %v218
  %v248 = vadd.f32 %v184, %v223
  %v249 = vadd.f32 %v185, %v223
  %v250 = vadd.f32 %v186, %v228
  %v251 = vadd.f32 %v187, %v228
  %v252 = vadd.f32 %v188, %v233
  %v253 = vadd.f32 %v189, %v233
  %v254 = vadd.f32 %v190, %v238
  %v255 = vadd.f32 %v191, %v238
  %v256 = vmax.f32 %v240, 0.0
  %v257 = vmax.f32 %v241, 0.0
  %v258 = vmax.f32 %v242, 0.0
  %v259 = vmax.f32 %v243, 0.0
  %v260 = vmax.f32 %v244, 0.0
  %v261 = vmax.f32 %v245, 0.0
  %v262 = vmax.f32 %v246, 0.0
  %v263 = vmax.f32 %v247, 0.0
  %v264 = vmax.f32 %v248, 0.0
  %v265 = vmax.f32 %v249, 0.0
  %v266 = vmax.f32 %v250, 0.0
  %v267 = vmax.f32 %v251, 0.0
  %v268 = vmax.f32 %v252, 0.0
  %v269 = vmax.f32 %v253, 0.0
  %v270 = vmax.f32 %v254, 0.0
  %v271 = vmax.f32 %v255, 0.0
  %v272 = vld [vmem:[%s3] sm:$0xff]
  %v273 = vld [vmem:[%s3 + $0x8] sm:$0xff]
  %v274 = vld [vmem:[%s3 + $0x10] sm:$0xff]
  %v275 = vld [vmem:[%s3 + $0x18] sm:$0xff]
  %v276 = vld [vmem:[%s3 + $0x20] sm:$0xff]
  %v277 = vld [vmem:[%s3 + $0x28] sm:$0xff]
  %v278 = vld [vmem:[%s3 + $0x30] sm:$0xff]
  %v279 = vld [vmem:[%s3 + $0x38] sm:$0xff]
  %v280 = vld [vmem:[%s4] sm:$0xff]
  %v281 = vld [vmem:[%s4 + $0x8] sm:$0xff]
  %v282 = vld [vmem:[%s4 + $0x10] sm:$0xff]
  %v283 = vld [vmem:[%s4 + $0x18] sm:$0xff]
  %v284 = vld [vmem:[%s4 + $0x20] sm:$0xff]
  %v285 = vld [vmem:[%s4 + $0x28] sm:$0xff]
  %v286 = vld [vmem:[%s4 + $0x30] sm:$0xff]
  %v287 = vld [vmem:[%s4 + $0x38] sm:$0xff]
  %289 = vset.pattern.permute.xlu0 0
  %290 = vperm.xlu0 %289, %v280
  %v291 = vpop.permute.xlu0 %290
  %294 = vset.pattern.permute.xlu0 0
  %295 = vperm.xlu0 %294, %v281
  %v296 = vpop.permute.xlu0 %295
  %299 = vset.pattern.permute.xlu0 0
  %300 = vperm.xlu0 %299, %v282
  %v301 = vpop.permute.xlu0 %300
  %304 = vset.pattern.permute.xlu0 0
  %305 = vperm.xlu0 %304, %v283
  %v306 = vpop.permute.xlu0 %305
  %309 = vset.pattern.permute.xlu0 0
  %310 = vperm.xlu0 %309, %v284
  %v311 = vpop.permute.xlu0 %310
  %314 = vset.pattern.permute.xlu0 0
  %315 = vperm.xlu0 %314, %v285
  %v316 = vpop.permute.xlu0 %315
  %319 = vset.pattern.permute.xlu0 0
  %320 = vperm.xlu0 %319, %v286
  %v321 = vpop.permute.xlu0 %320
  %324 = vset.pattern.permute.xlu0 0
  %325 = vperm.xlu0 %324, %v287
  %v326 = vpop.permute.xlu0 %325
  %vm328 = vcmask 523264
  %v330 = vsel %vm328, %v272, 0
  %v333 = vsel %vm328, %v273, 0
  %v336 = vsel %vm328, %v274, 0
  %v339 = vsel %vm328, %v275, 0
  %v342 = vsel %vm328, %v276, 0
  %v345 = vsel %vm328, %v277, 0
  %v348 = vsel %vm328, %v278, 0
  %v351 = vsel %vm328, %v279, 0
  %353 = vmatprep.subr.mxu0 %v257
  %354 = vmatpush1.msra.mxu0 %v256
  %355 = vmatprep.subr.mxu0 %v259
  %356 = vmatpush1.msra.mxu0 %v258
  %357 = vmatprep.subr.mxu0 %v261
  %358 = vmatpush1.msra.mxu0 %v260
  %359 = vmatprep.subr.mxu0 %v263
  %360 = vmatpush1.msra.mxu0 %v262
  %361 = vmatprep.subr.mxu0 %v265
  %362 = vmatpush1.msra.mxu0 %v264
  %363 = vmatprep.subr.mxu0 %v267
  %364 = vmatpush1.msra.mxu0 %v266
  %365 = vmatprep.subr.mxu0 %v269
  %366 = vmatpush1.msra.mxu0 %v268
  %367 = vmatprep.subr.mxu0 %v271
  %368 = vmatpush1.msra.mxu0 %v270
  %369 = vmatprep.subr.mxu0 0.0
  %370 = vmatpush1.msra.mxu0 0.0
  %371 = vmatprep.subr.mxu0 0.0
  %372 = vmatpush1.msra.mxu0 0.0
  %373 = vmatprep.subr.mxu0 0.0
  %374 = vmatpush1.msra.mxu0 0.0
  %375 = vmatprep.subr.mxu0 0.0
  %376 = vmatpush1.msra.mxu0 0.0
  %377 = vmatprep.subr.mxu0 0.0
  %378 = vmatpush1.msra.mxu0 0.0
  %379 = vmatprep.subr.mxu0 0.0
  %380 = vmatpush1.msra.mxu0 0.0
  %381 = vmatprep.subr.mxu0 0.0
  %382 = vmatpush1.msra.mxu0 0.0
  %383 = vmatprep.subr.mxu0 0.0
  %384 = vmatpush1.msra.mxu0 0.0
  %385 = vmatprep.subr.mxu0 0.0
  %386 = vmatpush1.msra.mxu0 0.0
  %387 = vmatprep.subr.mxu0 0.0
  %388 = vmatpush1.msra.mxu0 0.0
  %389 = vmatprep.subr.mxu0 0.0
  %390 = vmatpush1.msra.mxu0 0.0
  %391 = vmatprep.subr.mxu0 0.0
  %392 = vmatpush1.msra.mxu0 0.0
  %393 = vmatprep.subr.mxu0 0.0
  %394 = vmatpush1.msra.mxu0 0.0
  %395 = vmatprep.subr.mxu0 0.0
  %396 = vmatpush1.msra.mxu0 0.0
  %397 = vmatprep.subr.mxu0 0.0
  %398 = vmatpush1.msra.mxu0 0.0
  %399 = vmatprep.subr.mxu0 0.0
  %400 = vmatpush1.msra.mxu0 0.0
  %401 = vmatprep.subr.mxu0 0.0
  %402 = vmatpush1.msra.mxu0 0.0
  %403 = vmatprep.subr.mxu0 0.0
  %404 = vmatpush1.msra.mxu0 0.0
  %405 = vmatprep.subr.mxu0 0.0
  %406 = vmatpush1.msra.mxu0 0.0
  %407 = vmatprep.subr.mxu0 0.0
  %408 = vmatpush1.msra.mxu0 0.0
  %409 = vmatprep.subr.mxu0 0.0
  %410 = vmatpush1.msra.mxu0 0.0
  %411 = vmatprep.subr.mxu0 0.0
  %412 = vmatpush1.msra.mxu0 0.0
  %413 = vmatprep.subr.mxu0 0.0
  %414 = vmatpush1.msra.mxu0 0.0
  %415 = vmatprep.subr.mxu0 0.0
  %416 = vmatpush1.msra.mxu0 0.0
  %417 = vmatprep.mubr.f32.mxu0 0.0
  %418 = vmatmul.mubr.f32.gmra.mrb[0].mxu0 %v330
  %v419 = vpop.f32.mrb[0].mxu0
  %v420 = vadd.f32 %v291, %v419
  %v421 = vpop.f32.mrb[0].mxu0
  %v422 = vadd.f32 %v291, %v421
  %423 = vmatprep.mubr.f32.mxu0 0.0
  %424 = vmatmul.mubr.f32.gmra.mrb[0].mxu0 %v333
  %v425 = vpop.f32.mrb[0].mxu0
  %v426 = vadd.f32 %v296, %v425
  %v427 = vpop.f32.mrb[0].mxu0
  %v428 = vadd.f32 %v296, %v427
  %429 = vmatprep.mubr.f32.mxu0 0.0
  %430 = vmatmul.mubr.f32.gmra.mrb[0].mxu0 %v336
  %v431 = vpop.f32.mrb[0].mxu0
  %v432 = vadd.f32 %v301, %v431
  %v433 = vpop.f32.mrb[0].mxu0
  %v434 = vadd.f32 %v301, %v433
  %435 = vmatprep.mubr.f32.mxu0 0.0
  %436 = vmatmul.mubr.f32.gmra.mrb[0].mxu0 %v339
  %v437 = vpop.f32.mrb[0].mxu0
  %v438 = vadd.f32 %v306, %v437
  %v439 = vpop.f32.mrb[0].mxu0
  %v440 = vadd.f32 %v306, %v439
  %441 = vmatprep.mubr.f32.mxu0 0.0
  %442 = vmatmul.mubr.f32.gmra.mrb[0].mxu0 %v342
  %v443 = vpop.f32.mrb[0].mxu0
  %v444 = vadd.f32 %v311, %v443
  %v445 = vpop.f32.mrb[0].mxu0
  %v446 = vadd.f32 %v311, %v445
  %447 = vmatprep.mubr.f32.mxu0 0.0
  %448 = vmatmul.mubr.f32.gmra.mrb[0].mxu0 %v345
  %v449 = vpop.f32.mrb[0].mxu0
  %v450 = vadd.f32 %v316, %v449
  %v451 = vpop.f32.mrb[0].mxu0
  %v452 = vadd.f32 %v316, %v451
  %453 = vmatprep.mubr.f32.mxu0 0.0
  %454 = vmatmul.mubr.f32.gmra.mrb[0].mxu0 %v348
  %v455 = vpop.f32.mrb[0].mxu0
  %v456 = vadd.f32 %v321, %v455
  %v457 = vpop.f32.mrb[0].mxu0
  %v458 = vadd.f32 %v321, %v457
  %459 = vmatprep.mubr.f32.mxu0 0.0
  %460 = vmatmul.mubr.f32.gmra.mrb[0].mxu0 %v351
  %v461 = vpop.f32.mrb[0].mxu0
  %v462 = vadd.f32 %v326, %v461
  %v463 = vpop.f32.mrb[0].mxu0
  %v464 = vadd.f32 %v326, %v463
  %465 = vdwg.mxu0
  %v466 = vmax.f32 %v420, 0.0
  %v467 = vmax.f32 %v422, 0.0
  %v468 = vmax.f32 %v426, 0.0
  %v469 = vmax.f32 %v428, 0.0
  %v470 = vmax.f32 %v432, 0.0
  %v471 = vmax.f32 %v434, 0.0
  %v472 = vmax.f32 %v438, 0.0
  %v473 = vmax.f32 %v440, 0.0
  %v474 = vmax.f32 %v444, 0.0
  %v475 = vmax.f32 %v446, 0.0
  %v476 = vmax.f32 %v450, 0.0
  %v477 = vmax.f32 %v452, 0.0
  %v478 = vmax.f32 %v456, 0.0
  %v479 = vmax.f32 %v458, 0.0
  %v480 = vmax.f32 %v462, 0.0
  %v481 = vmax.f32 %v464, 0.0
  %v482 = vld [vmem:[%s5] sm:$0xf]
  %v483 = vld [vmem:[%s6] sm:$0xf]
  %485 = vset.pattern.permute.xlu0 0
  %486 = vperm.xlu0 %485, %v483
  %v487 = vpop.permute.xlu0 %486
  %v490 = vsel %vm328, %v482, 0
  %492 = vmatprep.subr.mxu0 %v467
  %493 = vmatpush1.msra.mxu0 %v466
  %494 = vmatprep.subr.mxu0 %v469
  %495 = vmatpush1.msra.mxu0 %v468
  %496 = vmatprep.subr.mxu0 %v471
  %497 = vmatpush1.msra.mxu0 %v470
  %498 = vmatprep.subr.mxu0 %v473
  %499 = vmatpush1.msra.mxu0 %v472
  %500 = vmatprep.subr.mxu0 %v475
  %501 = vmatpush1.msra.mxu0 %v474
  %502 = vmatprep.subr.mxu0 %v477
  %503 = vmatpush1.msra.mxu0 %v476
  %504 = vmatprep.subr.mxu0 %v479
  %505 = vmatpush1.msra.mxu0 %v478
  %506 = vmatprep.subr.mxu0 %v481
  %507 = vmatpush1.msra.mxu0 %v480
  %508 = vmatprep.subr.mxu0 0.0
  %509 = vmatpush1.msra.mxu0 0.0
  %510 = vmatprep.subr.mxu0 0.0
  %511 = vmatpush1.msra.mxu0 0.0
  %512 = vmatprep.subr.mxu0 0.0
  %513 = vmatpush1.msra.mxu0 0.0
  %514 = vmatprep.subr.mxu0 0.0
  %515 = vmatpush1.msra.mxu0 0.0
  %516 = vmatprep.subr.mxu0 0.0
  %517 = vmatpush1.msra.mxu0 0.0
  %518 = vmatprep.subr.mxu0 0.0
  %519 = vmatpush1.msra.mxu0 0.0
  %520 = vmatprep.subr.mxu0 0.0
  %521 = vmatpush1.msra.mxu0 0.0
  %522 = vmatprep.subr.mxu0 0.0
  %523 = vmatpush1.msra.mxu0 0.0
  %524 = vmatprep.subr.mxu0 0.0
  %525 = vmatpush1.msra.mxu0 0.0
  %526 = vmatprep.subr.mxu0 0.0
  %527 = vmatpush1.msra.mxu0 0.0
  %528 = vmatprep.subr.mxu0 0.0
  %529 = vmatpush1.msra.mxu0 0.0
  %530 = vmatprep.subr.mxu0 0.0
  %531 = vmatpush1.msra.mxu0 0.0
  %532 = vmatprep.subr.mxu0 0.0
  %533 = vmatpush1.msra.mxu0 0.0
  %534 = vmatprep.subr.mxu0 0.0
  %535 = vmatpush1.msra.mxu0 0.0
  %536 = vmatprep.subr.mxu0 0.0
  %537 = vmatpush1.msra.mxu0 0.0
  %538 = vmatprep.subr.mxu0 0.0
  %539 = vmatpush1.msra.mxu0 0.0
  %540 = vmatprep.subr.mxu0 0.0
  %541 = vmatpush1.msra.mxu0 0.0
  %542 = vmatprep.subr.mxu0 0.0
  %543 = vmatpush1.msra.mxu0 0.0
  %544 = vmatprep.subr.mxu0 0.0
  %545 = vmatpush1.msra.mxu0 0.0
  %546 = vmatprep.subr.mxu0 0.0
  %547 = vmatpush1.msra.mxu0 0.0
  %548 = vmatprep.subr.mxu0 0.0
  %549 = vmatpush1.msra.mxu0 0.0
  %550 = vmatprep.subr.mxu0 0.0
  %551 = vmatpush1.msra.mxu0 0.0
  %552 = vmatprep.subr.mxu0 0.0
  %553 = vmatpush1.msra.mxu0 0.0
  %554 = vmatprep.subr.mxu0 0.0
  %555 = vmatpush1.msra.mxu0 0.0
  %556 = vmatprep.mubr.f32.mxu0 0.0
  %557 = vmatmul.mubr.f32.gmra.mrb[0].mxu0 %v490
  %v558 = vpop.f32.mrb[0].mxu0
  %v559 = vadd.f32 %v487, %v558
  %v560 = vpop.f32.mrb[0].mxu0
  %v561 = vadd.f32 %v487, %v560
  %562 = vdwg.mxu0
  %v565 = vcombine.low %v559, %v561
  %567 = vst [vmem:[%s7] sm:$0xff] %v565
  // Predicated region
  $region30: #{diffusion_nn_forward.1} parent=0 // pred_check
    _
  $region31: #{diffusion_nn_forward.1} parent=0 // pred_check_branch
    %569 = sbr.rel (0) target = $region33
  $region32: #{diffusion_nn_forward.1} parent=0 // pred_region
    _
  $region33: #{diffusion_nn_forward.1} parent=0 // pred_fallthru
    _
  // Predicated region
  $region34: #{diffusion_nn_forward.1} parent=0 // pred_check
    _
  $region35: #{diffusion_nn_forward.1} parent=0 // pred_check_branch
    %571 = sbr.rel (0) target = $region37
  $region36: #{diffusion_nn_forward.1} parent=0 // pred_region
    _
  $region37: #{diffusion_nn_forward.1} parent=0 // pred_fallthru
    _

</llo_original>
